<compile_context>
chip_gen: v7x
topology: tpu7x:2x2x1
jax: 0.10.0
libtpu: 0.0.40
codegen_flags: <defaults>
</compile_context>

<pallas_src>
import functools

import jax
import jax.numpy as jnp
from jax.experimental import pallas as pl
from jax.experimental.pallas import tpu as pltpu


def _round_up(n, m):
    return ((n + m - 1) // m) * m


def _a2c_kernel(x_ref, w_ref, b_ref, out_ref, *, action_size):
    f32 = jnp.float32
    x = x_ref[...]                                   # [TB, D]

    # ---- shared trunk (2 matmuls) ----
    h = jnp.dot(x, w_ref[0], preferred_element_type=f32) + b_ref[0:1, :]
    h = jnp.maximum(h, 0.0)
    h = jnp.dot(h, w_ref[1], preferred_element_type=f32) + b_ref[1:2, :]
    h = jnp.maximum(h, 0.0)

    # ---- fused actor/critic first layers (1 matmul) ----
    # columns [0, half)      -> actor hidden
    # columns [half, 2*half) -> critic hidden
    hd = jnp.dot(h, w_ref[2], preferred_element_type=f32) + b_ref[2:3, :]
    hd = jnp.maximum(hd, 0.0)

    # ---- fused actor/critic second layers (1 block-diagonal matmul) ----
    # lanes [0, A) -> actor logits, lane A -> critic value, lanes > A -> 0
    out = jnp.dot(hd, w_ref[3], preferred_element_type=f32) + b_ref[3:4, :]

    # ---- numerically-stable softmax over the real logit lanes only ----
    lane = jax.lax.broadcasted_iota(jnp.int32, out.shape, 1)
    neg_big = jnp.float32(-1e30)
    logits = jnp.where(lane < action_size, out, neg_big)
    m = jnp.max(logits, axis=-1, keepdims=True)
    e = jnp.exp(logits - m)                          # padded lanes -> exactly 0
    denom = jnp.sum(e, axis=-1, keepdims=True)
    probs = e * pl.reciprocal(denom, approx=True)    # EUP vrcp

    # ---- single lane-dense full-slab store: [probs | value | zeros] ----
    out_ref[...] = probs + jnp.where(lane == action_size, out, 0.0)


def pack_params(params, state_size, action_size, hidden_size):
    """Pack all 12 tensors into two lane-dense, zero-padded f32 buffers."""
    half = hidden_size // 2
    D = _round_up(max(state_size, hidden_size, action_size + 1), 128)

    w = jnp.zeros((4, D, D), jnp.float32)
    w = w.at[0, :state_size, :hidden_size].set(params["w1"])
    w = w.at[1, :hidden_size, :hidden_size].set(params["w2"])
    # fused head first layers: [Wa1 | Wc1]
    w = w.at[2, :hidden_size, :half].set(params["wa1"])
    w = w.at[2, :hidden_size, half:2 * half].set(params["wc1"])
    # fused head second layers, block-diagonal: logits in lanes [0, A), value in lane A
    w = w.at[3, :half, :action_size].set(params["wa2"])
    w = w.at[3, half:2 * half, action_size:action_size + 1].set(params["wc2"])

    b = jnp.zeros((8, D), jnp.float32)
    b = b.at[0, :hidden_size].set(params["b1"][0])
    b = b.at[1, :hidden_size].set(params["b2"][0])
    b = b.at[2, :half].set(params["ba1"][0])
    b = b.at[2, half:2 * half].set(params["bc1"][0])
    b = b.at[3, :action_size].set(params["ba2"][0])
    b = b.at[3, action_size].set(params["bc2"][0, 0])
    return w, b


def a2c_pricing_forward(x, w_packed, b_packed, action_size):
    """x: [B, state_size] f32; packed params from pack_params()."""
    B, S = x.shape
    D = w_packed.shape[-1]

    # Pad batch to a sublane-friendly multiple; tile it if it is large so a
    # real grid (parallel across TCs on v7x) engages the MXU.
    Bp = _round_up(B, 8)
    TB = 256 if Bp >= 256 else Bp
    Bp = _round_up(Bp, TB)
    grid = (Bp // TB,)

    x_pad = jnp.zeros((Bp, D), jnp.float32).at[:B, :S].set(x)

    out = pl.pallas_call(
        functools.partial(_a2c_kernel, action_size=action_size),
        grid=grid,
        in_specs=[
            pl.BlockSpec((TB, D), lambda i: (i, 0)),       # x tile
            pl.BlockSpec((4, D, D), lambda i: (0, 0, 0)),  # packed weights (resident)
            pl.BlockSpec((8, D), lambda i: (0, 0)),        # packed biases (resident)
        ],
        out_specs=pl.BlockSpec((TB, D), lambda i: (i, 0)),
        out_shape=jax.ShapeDtypeStruct((Bp, D), jnp.float32),
        compiler_params=pltpu.CompilerParams(
            dimension_semantics=("parallel",)),
    )(x_pad, w_packed, b_packed)

    probs = out[:B, :action_size]
    value = out[:B, action_size:action_size + 1]
    return probs, value


def init_params(key, state_size, action_size, hidden_size=128):
    """PyTorch-style uniform(-1/sqrt(fan_in), 1/sqrt(fan_in)) init."""
    half = hidden_size // 2

    def linear(k, fan_in, fan_out):
        kw, kb = jax.random.split(k)
        bound = 1.0 / jnp.sqrt(jnp.float32(fan_in))
        w = jax.random.uniform(kw, (fan_in, fan_out), jnp.float32, -bound, bound)
        b = jax.random.uniform(kb, (1, fan_out), jnp.float32, -bound, bound)
        return w, b

    keys = jax.random.split(key, 6)
    w1, b1 = linear(keys[0], state_size, hidden_size)
    w2, b2 = linear(keys[1], hidden_size, hidden_size)
    wa1, ba1 = linear(keys[2], hidden_size, half)
    wa2, ba2 = linear(keys[3], half, action_size)
    wc1, bc1 = linear(keys[4], hidden_size, half)
    wc2, bc2 = linear(keys[5], half, 1)
    return dict(w1=w1, b1=b1, w2=w2, b2=b2,
                wa1=wa1, ba1=ba1, wa2=wa2, ba2=ba2,
                wc1=wc1, bc1=bc1, wc2=wc2, bc2=bc2)


def _reference_forward(x, p):
    h = jnp.maximum(x @ p["w1"] + p["b1"], 0.0)
    h = jnp.maximum(h @ p["w2"] + p["b2"], 0.0)
    a = jnp.maximum(h @ p["wa1"] + p["ba1"], 0.0)
    logits = a @ p["wa2"] + p["ba2"]
    probs = jax.nn.softmax(logits, axis=-1)
    c = jnp.maximum(h @ p["wc1"] + p["bc1"], 0.0)
    v = c @ p["wc2"] + p["bc2"]
    return probs, v


if __name__ == "__main__":
    key = jax.random.PRNGKey(0)
    k_x, k_p = jax.random.split(key)

    batch = 8
    state_size = 16
    action_size = 4
    hidden_size = 32

    x = jax.random.normal(k_x, (batch, state_size), jnp.float32)
    params = init_params(k_p, state_size, action_size, hidden_size)
    w_packed, b_packed = pack_params(params, state_size, action_size, hidden_size)

    probs, value = a2c_pricing_forward(x, w_packed, b_packed, action_size)
    probs, value = jax.block_until_ready((probs, value))

    # sanity check against a pure-JAX reference
    ref_probs, ref_value = _reference_forward(x, params)
    assert probs.shape == (batch, action_size)
    assert value.shape == (batch, 1)
    # tolerances relaxed for the approximate (EUP) softmax reciprocal
    assert jnp.allclose(probs, ref_probs, atol=2e-3, rtol=2e-3)
    assert jnp.allclose(value, ref_value, atol=2e-3, rtol=2e-3)
    assert jnp.allclose(jnp.sum(probs, axis=-1), 1.0, atol=2e-3)

    print("KERNEL_OK")
</pallas_src>

<mosaic_0001>
module attributes {stable_mosaic.version = 11 : i64} {
  func.func @_a2c_kernel(%arg0: i32, %arg1: memref<8x128xf32, #tpu.memory_space<vmem>>, %arg2: memref<4x128x128xf32, #tpu.memory_space<vmem>>, %arg3: memref<8x128xf32, #tpu.memory_space<vmem>>, %arg4: memref<8x128xf32, #tpu.memory_space<vmem>>) attributes {dimension_semantics = [#tpu.dimension_semantics<parallel>], iteration_bounds = array<i64: 1>, scalar_prefetch = 0 : i64, scratch_operands = 0 : i64, tpu.core_type = #tpu.core_type<tc>, window_params = [{transform_indices = @transform_0, window_bounds = array<i64: 8, 128>}, {pipeline_mode = #tpu.pipeline_mode<synchronous>, transform_indices = @transform_1, window_bounds = array<i64: 4, 128, 128>}, {pipeline_mode = #tpu.pipeline_mode<synchronous>, transform_indices = @transform_2, window_bounds = array<i64: 8, 128>}, {transform_indices = @transform_3, window_bounds = array<i64: 8, 128>}]} {
    %c0 = arith.constant 0 : index
    %c0_0 = arith.constant 0 : index
    %0 = vector.load %arg1[%c0, %c0_0] : memref<8x128xf32, #tpu.memory_space<vmem>>, vector<8x128xf32>
    %c0_1 = arith.constant 0 : index
    %c0_2 = arith.constant 0 : index
    %c0_3 = arith.constant 0 : index
    %1 = vector.load %arg2[%c0_1, %c0_2, %c0_3] : memref<4x128x128xf32, #tpu.memory_space<vmem>>, vector<1x128x128xf32>
    %2 = vector.shape_cast %1 : vector<1x128x128xf32> to vector<128x128xf32>
    %cst = arith.constant dense<0.000000e+00> : vector<8x128xf32>
    %3 = tpu.matmul %0, %2, %cst {dimension_numbers = #tpu.dot_dimension_numbers<[1], [0], [0], [1], [0, 0, 1, 1], [], []>} : vector<8x128xf32>, vector<128x128xf32>, vector<8x128xf32> -> vector<8x128xf32>
    %c0_4 = arith.constant 0 : index
    %c0_5 = arith.constant 0 : index
    %4 = vector.load %arg3[%c0_4, %c0_5] : memref<8x128xf32, #tpu.memory_space<vmem>>, vector<1x128xf32>
    %5 = vector.broadcast %4 : vector<1x128xf32> to vector<8x128xf32>
    %6 = arith.addf %3, %5 : vector<8x128xf32>
    %cst_6 = arith.constant 0.000000e+00 : f32
    %7 = vector.broadcast %cst_6 : f32 to vector<8x128xf32>
    %8 = arith.maximumf %6, %7 : vector<8x128xf32>
    %c1 = arith.constant 1 : index
    %c0_7 = arith.constant 0 : index
    %c0_8 = arith.constant 0 : index
    %9 = vector.load %arg2[%c1, %c0_7, %c0_8] : memref<4x128x128xf32, #tpu.memory_space<vmem>>, vector<1x128x128xf32>
    %10 = vector.shape_cast %9 : vector<1x128x128xf32> to vector<128x128xf32>
    %cst_9 = arith.constant dense<0.000000e+00> : vector<8x128xf32>
    %11 = tpu.matmul %8, %10, %cst_9 {dimension_numbers = #tpu.dot_dimension_numbers<[1], [0], [0], [1], [0, 0, 1, 1], [], []>} : vector<8x128xf32>, vector<128x128xf32>, vector<8x128xf32> -> vector<8x128xf32>
    %c1_10 = arith.constant 1 : index
    %c0_11 = arith.constant 0 : index
    %12 = vector.load %arg3[%c1_10, %c0_11] : memref<8x128xf32, #tpu.memory_space<vmem>>, vector<1x128xf32>
    %13 = vector.broadcast %12 : vector<1x128xf32> to vector<8x128xf32>
    %14 = arith.addf %11, %13 : vector<8x128xf32>
    %cst_12 = arith.constant 0.000000e+00 : f32
    %15 = vector.broadcast %cst_12 : f32 to vector<8x128xf32>
    %16 = arith.maximumf %14, %15 : vector<8x128xf32>
    %c2 = arith.constant 2 : index
    %c0_13 = arith.constant 0 : index
    %c0_14 = arith.constant 0 : index
    %17 = vector.load %arg2[%c2, %c0_13, %c0_14] : memref<4x128x128xf32, #tpu.memory_space<vmem>>, vector<1x128x128xf32>
    %18 = vector.shape_cast %17 : vector<1x128x128xf32> to vector<128x128xf32>
    %cst_15 = arith.constant dense<0.000000e+00> : vector<8x128xf32>
    %19 = tpu.matmul %16, %18, %cst_15 {dimension_numbers = #tpu.dot_dimension_numbers<[1], [0], [0], [1], [0, 0, 1, 1], [], []>} : vector<8x128xf32>, vector<128x128xf32>, vector<8x128xf32> -> vector<8x128xf32>
    %c2_16 = arith.constant 2 : index
    %c0_17 = arith.constant 0 : index
    %20 = vector.load %arg3[%c2_16, %c0_17] : memref<8x128xf32, #tpu.memory_space<vmem>>, vector<1x128xf32>
    %21 = vector.broadcast %20 : vector<1x128xf32> to vector<8x128xf32>
    %22 = arith.addf %19, %21 : vector<8x128xf32>
    %cst_18 = arith.constant 0.000000e+00 : f32
    %23 = vector.broadcast %cst_18 : f32 to vector<8x128xf32>
    %24 = arith.maximumf %22, %23 : vector<8x128xf32>
    %c3 = arith.constant 3 : index
    %c0_19 = arith.constant 0 : index
    %c0_20 = arith.constant 0 : index
    %25 = vector.load %arg2[%c3, %c0_19, %c0_20] : memref<4x128x128xf32, #tpu.memory_space<vmem>>, vector<1x128x128xf32>
    %26 = vector.shape_cast %25 : vector<1x128x128xf32> to vector<128x128xf32>
    %cst_21 = arith.constant dense<0.000000e+00> : vector<8x128xf32>
    %27 = tpu.matmul %24, %26, %cst_21 {dimension_numbers = #tpu.dot_dimension_numbers<[1], [0], [0], [1], [0, 0, 1, 1], [], []>} : vector<8x128xf32>, vector<128x128xf32>, vector<8x128xf32> -> vector<8x128xf32>
    %c3_22 = arith.constant 3 : index
    %c0_23 = arith.constant 0 : index
    %28 = vector.load %arg3[%c3_22, %c0_23] : memref<8x128xf32, #tpu.memory_space<vmem>>, vector<1x128xf32>
    %29 = vector.broadcast %28 : vector<1x128xf32> to vector<8x128xf32>
    %30 = arith.addf %27, %29 : vector<8x128xf32>
    %31 = tpu.iota {dimensions = array<i32: 1>} : vector<8x128xi32>
    %c4_i32 = arith.constant 4 : i32
    %32 = vector.broadcast %c4_i32 : i32 to vector<8x128xi32>
    %33 = arith.cmpi slt, %31, %32 : vector<8x128xi32>
    %cst_24 = arith.constant -1.000000e+30 : f32
    %34 = vector.broadcast %cst_24 : f32 to vector<8x128xf32>
    %35 = arith.select %33, %30, %34 : vector<8x128xi1>, vector<8x128xf32>
    %cst_25 = arith.constant dense<0xFF800000> : vector<8xf32>
    %36 = vector.multi_reduction <maximumf>, %35, %cst_25 [1] : vector<8x128xf32> to vector<8xf32>
    %37 = vector.shape_cast %36 : vector<8xf32> to vector<8x1xf32>
    %38 = vector.broadcast %37 : vector<8x1xf32> to vector<8x128xf32>
    %39 = arith.subf %35, %38 : vector<8x128xf32>
    %40 = math.exp %39 : vector<8x128xf32>
    %cst_26 = arith.constant dense<0.000000e+00> : vector<8xf32>
    %41 = vector.multi_reduction <add>, %40, %cst_26 [1] : vector<8x128xf32> to vector<8xf32>
    %42 = vector.shape_cast %41 : vector<8xf32> to vector<8x1xf32>
    %43 = tpu.reciprocal %42 {approx = true} : vector<8x1xf32> -> vector<8x1xf32>
    %44 = vector.broadcast %43 : vector<8x1xf32> to vector<8x128xf32>
    %45 = arith.mulf %40, %44 : vector<8x128xf32>
    %c4_i32_27 = arith.constant 4 : i32
    %46 = vector.broadcast %c4_i32_27 : i32 to vector<8x128xi32>
    %47 = arith.cmpi eq, %31, %46 : vector<8x128xi32>
    %cst_28 = arith.constant 0.000000e+00 : f32
    %48 = vector.broadcast %cst_28 : f32 to vector<8x128xf32>
    %49 = arith.select %47, %30, %48 : vector<8x128xi1>, vector<8x128xf32>
    %50 = arith.addf %45, %49 : vector<8x128xf32>
    %c0_29 = arith.constant 0 : index
    %c0_30 = arith.constant 0 : index
    %51 = vector.load %arg4[%c0_29, %c0_30] : memref<8x128xf32, #tpu.memory_space<vmem>>, vector<8x128xf32>
    tpu.vector_store %arg4[%c0_29, %c0_30], %50 {strides = array<i32>} : memref<8x128xf32, #tpu.memory_space<vmem>>, vector<8x128xf32>,
    return
  }
  func.func @transform_0(%arg0: i32) -> (i32, i32) {
    %c0_i32 = arith.constant 0 : i32
    %c0_i32_0 = arith.constant 0 : i32
    return %arg0, %c0_i32 : i32, i32
  }
  func.func @transform_1(%arg0: i32) -> (i32, i32, i32) {
    %c0_i32 = arith.constant 0 : i32
    %c0_i32_0 = arith.constant 0 : i32
    %c0_i32_1 = arith.constant 0 : i32
    %c0_i32_2 = arith.constant 0 : i32
    return %c0_i32, %c0_i32_0, %c0_i32_1 : i32, i32, i32
  }
  func.func @transform_2(%arg0: i32) -> (i32, i32) {
    %c0_i32 = arith.constant 0 : i32
    %c0_i32_0 = arith.constant 0 : i32
    %c0_i32_1 = arith.constant 0 : i32
    return %c0_i32, %c0_i32_0 : i32, i32
  }
  func.func @transform_3(%arg0: i32) -> (i32, i32) {
    %c0_i32 = arith.constant 0 : i32
    %c0_i32_0 = arith.constant 0 : i32
    return %arg0, %c0_i32 : i32, i32
  }
}

</mosaic_0001>

<llo_original>
// kernel: tpu_custom_call.1
$region0: #{tpu_custom_call.1}
  #allocation0 [shape = 'u32[]', space=smem, size = 0x4, offset = 0x4, fixed_abs, tag = 'smem constant byte address 0x4 - core index']
  #allocation1 [shape = 'u32[144,128]{1,0:T(1,128)}', space=vmem, size = 0x12000, scoped, tag = 'internal scratch']
  %s0 = inlined_call_operand.hbm [shape: f32[8,128], index: 0, kind: input, shape index: {}]
  %s1 = inlined_call_operand.hbm [shape: f32[4,128,128], index: 1, kind: input, shape index: {}]
  %s2 = inlined_call_operand.hbm [shape: f32[8,128], index: 2, kind: input, shape index: {}]
  %s3 = inlined_call_operand.hbm [shape: f32[8,128], index: 3, kind: output, shape index: {}]
  %s4 = sld [smem:[#allocation0]]
  $region34: #{tpu_custom_call.1} parent=0
    _
  %s6 = ssub.s32 1, %s4
  %s7 = scalar_select 0, %s6, %s4
  $region1: #{tpu_custom_call.1} parent=0
    #allocation2 [shape = 'u8[4096]{0}', space=vmem, size = 0x1000, scoped, tag = 'input window, operand 0, single buffered']
    #allocation3 [shape = 's32[1]{0}', space=sflag, size = 0x4, scoped, tag = 'scoped memory for tpu_custom_call.1']
    #allocation4 [shape = 's32[1]{0}', space=sflag, size = 0x4, scoped, tag = 'scoped memory for tpu_custom_call.1']
    #allocation5 [shape = 'u8[262144]{0}', space=vmem, size = 0x40000, scoped, tag = 'input window, operand 1, single buffered']
    #allocation6 [shape = 's32[1]{0}', space=sflag, size = 0x4, scoped, tag = 'scoped memory for tpu_custom_call.1']
    #allocation7 [shape = 'u8[4096]{0}', space=vmem, size = 0x1000, scoped, tag = 'input window, operand 2, single buffered']
    #allocation8 [shape = 'u8[4096]{0}', space=vmem, size = 0x1000, scoped, tag = 'output window, operand 0, single buffered']
    %8 = vsyncpa [#allocation3], 0
    %9 = vsyncpa [#allocation6], 0
    %10 = vsyncpa [#allocation4], 0
    // Predicated region
    $region2: #{tpu_custom_call.1} parent=1 // pred_check
      _
    $region3: #{tpu_custom_call.1} parent=1 // pred_check_branch
      %12 = sbr.rel (0) target = $region5
    $region4: #{tpu_custom_call.1} parent=1 // pred_region
      %s14 = ssub.s32 128, 128
      %15 = vsyncadd [#allocation3], %s14
      %s17 = sshll.u32 [#allocation2], 4
      %s18 = int_to_ptr.vmem [resolvable:$true] %s17
      %20 = dma.hbm_to_vmem [thread:$0]  %s0, 128, %s18, [#allocation3]
    $region5: #{tpu_custom_call.1} parent=1 // pred_fallthru
      _
    // Predicated region
    $region6: #{tpu_custom_call.1} parent=1 // pred_check
      _
    $region7: #{tpu_custom_call.1} parent=1 // pred_check_branch
      %22 = sbr.rel (0) target = $region9
    $region8: #{tpu_custom_call.1} parent=1 // pred_region
      %s24 = ssub.s32 8192, 8192
      %25 = vsyncadd [#allocation6], %s24
      %s26 = sshll.u32 [#allocation5], 4
      %s27 = int_to_ptr.vmem [resolvable:$true] %s26
      %32 = dma.hbm_to_vmem [thread:$0]  %s1, 8192, %s27, [#allocation6], 128, 128, 8
    $region9: #{tpu_custom_call.1} parent=1 // pred_fallthru
      _
    // Predicated region
    $region10: #{tpu_custom_call.1} parent=1 // pred_check
      _
    $region11: #{tpu_custom_call.1} parent=1 // pred_check_branch
      %34 = sbr.rel (0) target = $region13
    $region12: #{tpu_custom_call.1} parent=1 // pred_region
      %s36 = ssub.s32 128, 128
      %37 = vsyncadd [#allocation6], %s36
      %s39 = sshll.u32 [#allocation7], 4
      %s40 = int_to_ptr.vmem [resolvable:$true] %s39
      %42 = dma.hbm_to_vmem [thread:$0]  %s2, 128, %s40, [#allocation6]
    $region13: #{tpu_custom_call.1} parent=1 // pred_fallthru
      _
    // Predicated region
    $region14: #{tpu_custom_call.1} parent=1 // pred_check
      _
    $region15: #{tpu_custom_call.1} parent=1 // pred_check_branch
      %44 = sbr.rel (0) target = $region17
    $region16: #{tpu_custom_call.1} parent=1 // pred_region
      %45 = dma.done [#allocation3], 128
    $region17: #{tpu_custom_call.1} parent=1 // pred_fallthru
      _
    // Predicated region
    $region18: #{tpu_custom_call.1} parent=1 // pred_check
      _
    $region19: #{tpu_custom_call.1} parent=1 // pred_check_branch
      %47 = sbr.rel (0) target = $region21
    $region20: #{tpu_custom_call.1} parent=1 // pred_region
      %48 = dma.done [#allocation6], 8192
    $region21: #{tpu_custom_call.1} parent=1 // pred_fallthru
      _
    // Predicated region
    $region22: #{tpu_custom_call.1} parent=1 // pred_check
      _
    $region23: #{tpu_custom_call.1} parent=1 // pred_check_branch
      %50 = sbr.rel (0) target = $region25
    $region24: #{tpu_custom_call.1} parent=1 // pred_region
      %51 = dma.done [#allocation6], 128
    $region25: #{tpu_custom_call.1} parent=1 // pred_fallthru
      _
    %v52 = vld [vmem:[#allocation2] sm:$0xff]
    %v53 = vld [vmem:[#allocation5] sm:$0xff]
    %v54 = vld [vmem:[#allocation5 + $0x8] sm:$0xff]
    %v55 = vld [vmem:[#allocation5 + $0x10] sm:$0xff]
    %v56 = vld [vmem:[#allocation5 + $0x18] sm:$0xff]
    %v57 = vld [vmem:[#allocation5 + $0x20] sm:$0xff]
    %v58 = vld [vmem:[#allocation5 + $0x28] sm:$0xff]
    %v59 = vld [vmem:[#allocation5 + $0x30] sm:$0xff]
    %v60 = vld [vmem:[#allocation5 + $0x38] sm:$0xff]
    %v61 = vld [vmem:[#allocation5 + $0x40] sm:$0xff]
    %v62 = vld [vmem:[#allocation5 + $0x48] sm:$0xff]
    %v63 = vld [vmem:[#allocation5 + $0x50] sm:$0xff]
    %v64 = vld [vmem:[#allocation5 + $0x58] sm:$0xff]
    %v65 = vld [vmem:[#allocation5 + $0x60] sm:$0xff]
    %v66 = vld [vmem:[#allocation5 + $0x68] sm:$0xff]
    %v67 = vld [vmem:[#allocation5 + $0x70] sm:$0xff]
    %v68 = vld [vmem:[#allocation5 + $0x78] sm:$0xff]
    %v69 = vld [vmem:[#allocation7] sm:$0x1]
    %v70 = vlaneseq
    %v71 = vshrl.u32 %v70, 7
    %v72 = vsub.s32 0, %v71
    %v73 = vrot.slane %v69, %v72
    %74 = vmatprep.subr.mxu0 0.0
    %75 = vmatpush1.msra.mxu0 %v53
    %76 = vmatprep.subr.mxu0 0.0
    %77 = vmatpush1.msra.mxu0 %v54
    %78 = vmatprep.subr.mxu0 0.0
    %79 = vmatpush1.msra.mxu0 %v55
    %80 = vmatprep.subr.mxu0 0.0
    %81 = vmatpush1.msra.mxu0 %v56
    %82 = vmatprep.subr.mxu0 0.0
    %83 = vmatpush1.msra.mxu0 %v57
    %84 = vmatprep.subr.mxu0 0.0
    %85 = vmatpush1.msra.mxu0 %v58
    %86 = vmatprep.subr.mxu0 0.0
    %87 = vmatpush1.msra.mxu0 %v59
    %88 = vmatprep.subr.mxu0 0.0
    %89 = vmatpush1.msra.mxu0 %v60
    %90 = vmatprep.subr.mxu0 0.0
    %91 = vmatpush1.msra.mxu0 %v61
    %92 = vmatprep.subr.mxu0 0.0
    %93 = vmatpush1.msra.mxu0 %v62
    %94 = vmatprep.subr.mxu0 0.0
    %95 = vmatpush1.msra.mxu0 %v63
    %96 = vmatprep.subr.mxu0 0.0
    %97 = vmatpush1.msra.mxu0 %v64
    %98 = vmatprep.subr.mxu0 0.0
    %99 = vmatpush1.msra.mxu0 %v65
    %100 = vmatprep.subr.mxu0 0.0
    %101 = vmatpush1.msra.mxu0 %v66
    %102 = vmatprep.subr.mxu0 0.0
    %103 = vmatpush1.msra.mxu0 %v67
    %104 = vmatprep.subr.mxu0 0.0
    %105 = vmatpush1.msra.mxu0 %v68
    %106 = vmatprep.subr.mxu0 0.0
    %107 = vmatpush1.msra.mxu0 0.0
    %108 = vmatprep.subr.mxu0 0.0
    %109 = vmatpush1.msra.mxu0 0.0
    %110 = vmatprep.subr.mxu0 0.0
    %111 = vmatpush1.msra.mxu0 0.0
    %112 = vmatprep.subr.mxu0 0.0
    %113 = vmatpush1.msra.mxu0 0.0
    %114 = vmatprep.subr.mxu0 0.0
    %115 = vmatpush1.msra.mxu0 0.0
    %116 = vmatprep.subr.mxu0 0.0
    %117 = vmatpush1.msra.mxu0 0.0
    %118 = vmatprep.subr.mxu0 0.0
    %119 = vmatpush1.msra.mxu0 0.0
    %120 = vmatprep.subr.mxu0 0.0
    %121 = vmatpush1.msra.mxu0 0.0
    %122 = vmatprep.subr.mxu0 0.0
    %123 = vmatpush1.msra.mxu0 0.0
    %124 = vmatprep.subr.mxu0 0.0
    %125 = vmatpush1.msra.mxu0 0.0
    %126 = vmatprep.subr.mxu0 0.0
    %127 = vmatpush1.msra.mxu0 0.0
    %128 = vmatprep.subr.mxu0 0.0
    %129 = vmatpush1.msra.mxu0 0.0
    %130 = vmatprep.subr.mxu0 0.0
    %131 = vmatpush1.msra.mxu0 0.0
    %132 = vmatprep.subr.mxu0 0.0
    %133 = vmatpush1.msra.mxu0 0.0
    %134 = vmatprep.subr.mxu0 0.0
    %135 = vmatpush1.msra.mxu0 0.0
    %136 = vmatprep.subr.mxu0 0.0
    %137 = vmatpush1.msra.mxu0 0.0
    %138 = vmatprep.mubr.f32.mxu0 0.0
    %139 = vmatmul.mubr.f32.gmra.mrb[0].mxu0 %v52
    %v140 = vpop.f32.mrb[0].mxu0
    %v141 = vadd.f32 %v73, %v140
    %v142 = vpop.f32.mrb[0].mxu0
    %143 = vdwg.mxu0
    %v144 = vmax.f32 %v141, 0.0
    %s145 = scalar_lea.vmem [#allocation5], 128
    %v146 = vld [vmem:[%s145] sm:$0xff]
    %v147 = vld [vmem:[%s145 + $0x8] sm:$0xff]
    %v148 = vld [vmem:[%s145 + $0x10] sm:$0xff]
    %v149 = vld [vmem:[%s145 + $0x18] sm:$0xff]
    %v150 = vld [vmem:[%s145 + $0x20] sm:$0xff]
    %v151 = vld [vmem:[%s145 + $0x28] sm:$0xff]
    %v152 = vld [vmem:[%s145 + $0x30] sm:$0xff]
    %v153 = vld [vmem:[%s145 + $0x38] sm:$0xff]
    %v154 = vld [vmem:[%s145 + $0x40] sm:$0xff]
    %v155 = vld [vmem:[%s145 + $0x48] sm:$0xff]
    %v156 = vld [vmem:[%s145 + $0x50] sm:$0xff]
    %v157 = vld [vmem:[%s145 + $0x58] sm:$0xff]
    %v158 = vld [vmem:[%s145 + $0x60] sm:$0xff]
    %v159 = vld [vmem:[%s145 + $0x68] sm:$0xff]
    %v160 = vld [vmem:[%s145 + $0x70] sm:$0xff]
    %v161 = vld [vmem:[%s145 + $0x78] sm:$0xff]
    %v162 = vld [vmem:[#allocation7 + $0x1] sm:$0x1]
    %v163 = vlaneseq
    %v164 = vshrl.u32 %v163, 7
    %v165 = vsub.s32 0, %v164
    %v166 = vrot.slane %v162, %v165
    %167 = vmatprep.subr.mxu0 0.0
    %168 = vmatpush1.msra.mxu0 %v146
    %169 = vmatprep.subr.mxu0 0.0
    %170 = vmatpush1.msra.mxu0 %v147
    %171 = vmatprep.subr.mxu0 0.0
    %172 = vmatpush1.msra.mxu0 %v148
    %173 = vmatprep.subr.mxu0 0.0
    %174 = vmatpush1.msra.mxu0 %v149
    %175 = vmatprep.subr.mxu0 0.0
    %176 = vmatpush1.msra.mxu0 %v150
    %177 = vmatprep.subr.mxu0 0.0
    %178 = vmatpush1.msra.mxu0 %v151
    %179 = vmatprep.subr.mxu0 0.0
    %180 = vmatpush1.msra.mxu0 %v152
    %181 = vmatprep.subr.mxu0 0.0
    %182 = vmatpush1.msra.mxu0 %v153
    %183 = vmatprep.subr.mxu0 0.0
    %184 = vmatpush1.msra.mxu0 %v154
    %185 = vmatprep.subr.mxu0 0.0
    %186 = vmatpush1.msra.mxu0 %v155
    %187 = vmatprep.subr.mxu0 0.0
    %188 = vmatpush1.msra.mxu0 %v156
    %189 = vmatprep.subr.mxu0 0.0
    %190 = vmatpush1.msra.mxu0 %v157
    %191 = vmatprep.subr.mxu0 0.0
    %192 = vmatpush1.msra.mxu0 %v158
    %193 = vmatprep.subr.mxu0 0.0
    %194 = vmatpush1.msra.mxu0 %v159
    %195 = vmatprep.subr.mxu0 0.0
    %196 = vmatpush1.msra.mxu0 %v160
    %197 = vmatprep.subr.mxu0 0.0
    %198 = vmatpush1.msra.mxu0 %v161
    %199 = vmatprep.subr.mxu0 0.0
    %200 = vmatpush1.msra.mxu0 0.0
    %201 = vmatprep.subr.mxu0 0.0
    %202 = vmatpush1.msra.mxu0 0.0
    %203 = vmatprep.subr.mxu0 0.0
    %204 = vmatpush1.msra.mxu0 0.0
    %205 = vmatprep.subr.mxu0 0.0
    %206 = vmatpush1.msra.mxu0 0.0
    %207 = vmatprep.subr.mxu0 0.0
    %208 = vmatpush1.msra.mxu0 0.0
    %209 = vmatprep.subr.mxu0 0.0
    %210 = vmatpush1.msra.mxu0 0.0
    %211 = vmatprep.subr.mxu0 0.0
    %212 = vmatpush1.msra.mxu0 0.0
    %213 = vmatprep.subr.mxu0 0.0
    %214 = vmatpush1.msra.mxu0 0.0
    %215 = vmatprep.subr.mxu0 0.0
    %216 = vmatpush1.msra.mxu0 0.0
    %217 = vmatprep.subr.mxu0 0.0
    %218 = vmatpush1.msra.mxu0 0.0
    %219 = vmatprep.subr.mxu0 0.0
    %220 = vmatpush1.msra.mxu0 0.0
    %221 = vmatprep.subr.mxu0 0.0
    %222 = vmatpush1.msra.mxu0 0.0
    %223 = vmatprep.subr.mxu0 0.0
    %224 = vmatpush1.msra.mxu0 0.0
    %225 = vmatprep.subr.mxu0 0.0
    %226 = vmatpush1.msra.mxu0 0.0
    %227 = vmatprep.subr.mxu0 0.0
    %228 = vmatpush1.msra.mxu0 0.0
    %229 = vmatprep.subr.mxu0 0.0
    %230 = vmatpush1.msra.mxu0 0.0
    %231 = vmatprep.mubr.f32.mxu0 0.0
    %232 = vmatmul.mubr.f32.gmra.mrb[0].mxu0 %v144
    %v233 = vpop.f32.mrb[0].mxu0
    %v234 = vadd.f32 %v166, %v233
    %v235 = vpop.f32.mrb[0].mxu0
    %236 = vdwg.mxu0
    %v237 = vmax.f32 %v234, 0.0
    %s238 = scalar_lea.vmem [#allocation5], 256
    %v239 = vld [vmem:[%s238] sm:$0xff]
    %v240 = vld [vmem:[%s238 + $0x8] sm:$0xff]
    %v241 = vld [vmem:[%s238 + $0x10] sm:$0xff]
    %v242 = vld [vmem:[%s238 + $0x18] sm:$0xff]
    %v243 = vld [vmem:[%s238 + $0x20] sm:$0xff]
    %v244 = vld [vmem:[%s238 + $0x28] sm:$0xff]
    %v245 = vld [vmem:[%s238 + $0x30] sm:$0xff]
    %v246 = vld [vmem:[%s238 + $0x38] sm:$0xff]
    %v247 = vld [vmem:[%s238 + $0x40] sm:$0xff]
    %v248 = vld [vmem:[%s238 + $0x48] sm:$0xff]
    %v249 = vld [vmem:[%s238 + $0x50] sm:$0xff]
    %v250 = vld [vmem:[%s238 + $0x58] sm:$0xff]
    %v251 = vld [vmem:[%s238 + $0x60] sm:$0xff]
    %v252 = vld [vmem:[%s238 + $0x68] sm:$0xff]
    %v253 = vld [vmem:[%s238 + $0x70] sm:$0xff]
    %v254 = vld [vmem:[%s238 + $0x78] sm:$0xff]
    %v255 = vld [vmem:[#allocation7 + $0x2] sm:$0x1]
    %v256 = vlaneseq
    %v257 = vshrl.u32 %v256, 7
    %v258 = vsub.s32 0, %v257
    %v259 = vrot.slane %v255, %v258
    %260 = vmatprep.subr.mxu0 0.0
    %261 = vmatpush1.msra.mxu0 %v239
    %262 = vmatprep.subr.mxu0 0.0
    %263 = vmatpush1.msra.mxu0 %v240
    %264 = vmatprep.subr.mxu0 0.0
    %265 = vmatpush1.msra.mxu0 %v241
    %266 = vmatprep.subr.mxu0 0.0
    %267 = vmatpush1.msra.mxu0 %v242
    %268 = vmatprep.subr.mxu0 0.0
    %269 = vmatpush1.msra.mxu0 %v243
    %270 = vmatprep.subr.mxu0 0.0
    %271 = vmatpush1.msra.mxu0 %v244
    %272 = vmatprep.subr.mxu0 0.0
    %273 = vmatpush1.msra.mxu0 %v245
    %274 = vmatprep.subr.mxu0 0.0
    %275 = vmatpush1.msra.mxu0 %v246
    %276 = vmatprep.subr.mxu0 0.0
    %277 = vmatpush1.msra.mxu0 %v247
    %278 = vmatprep.subr.mxu0 0.0
    %279 = vmatpush1.msra.mxu0 %v248
    %280 = vmatprep.subr.mxu0 0.0
    %281 = vmatpush1.msra.mxu0 %v249
    %282 = vmatprep.subr.mxu0 0.0
    %283 = vmatpush1.msra.mxu0 %v250
    %284 = vmatprep.subr.mxu0 0.0
    %285 = vmatpush1.msra.mxu0 %v251
    %286 = vmatprep.subr.mxu0 0.0
    %287 = vmatpush1.msra.mxu0 %v252
    %288 = vmatprep.subr.mxu0 0.0
    %289 = vmatpush1.msra.mxu0 %v253
    %290 = vmatprep.subr.mxu0 0.0
    %291 = vmatpush1.msra.mxu0 %v254
    %292 = vmatprep.subr.mxu0 0.0
    %293 = vmatpush1.msra.mxu0 0.0
    %294 = vmatprep.subr.mxu0 0.0
    %295 = vmatpush1.msra.mxu0 0.0
    %296 = vmatprep.subr.mxu0 0.0
    %297 = vmatpush1.msra.mxu0 0.0
    %298 = vmatprep.subr.mxu0 0.0
    %299 = vmatpush1.msra.mxu0 0.0
    %300 = vmatprep.subr.mxu0 0.0
    %301 = vmatpush1.msra.mxu0 0.0
    %302 = vmatprep.subr.mxu0 0.0
    %303 = vmatpush1.msra.mxu0 0.0
    %304 = vmatprep.subr.mxu0 0.0
    %305 = vmatpush1.msra.mxu0 0.0
    %306 = vmatprep.subr.mxu0 0.0
    %307 = vmatpush1.msra.mxu0 0.0
    %308 = vmatprep.subr.mxu0 0.0
    %309 = vmatpush1.msra.mxu0 0.0
    %310 = vmatprep.subr.mxu0 0.0
    %311 = vmatpush1.msra.mxu0 0.0
    %312 = vmatprep.subr.mxu0 0.0
    %313 = vmatpush1.msra.mxu0 0.0
    %314 = vmatprep.subr.mxu0 0.0
    %315 = vmatpush1.msra.mxu0 0.0
    %316 = vmatprep.subr.mxu0 0.0
    %317 = vmatpush1.msra.mxu0 0.0
    %318 = vmatprep.subr.mxu0 0.0
    %319 = vmatpush1.msra.mxu0 0.0
    %320 = vmatprep.subr.mxu0 0.0
    %321 = vmatpush1.msra.mxu0 0.0
    %322 = vmatprep.subr.mxu0 0.0
    %323 = vmatpush1.msra.mxu0 0.0
    %324 = vmatprep.mubr.f32.mxu0 0.0
    %325 = vmatmul.mubr.f32.gmra.mrb[0].mxu0 %v237
    %v326 = vpop.f32.mrb[0].mxu0
    %v327 = vadd.f32 %v259, %v326
    %v328 = vpop.f32.mrb[0].mxu0
    %329 = vdwg.mxu0
    %v330 = vmax.f32 %v327, 0.0
    %s331 = scalar_lea.vmem [#allocation5], 384
    %v332 = vld [vmem:[%s331] sm:$0xff]
    %v333 = vld [vmem:[%s331 + $0x8] sm:$0xff]
    %v334 = vld [vmem:[%s331 + $0x10] sm:$0xff]
    %v335 = vld [vmem:[%s331 + $0x18] sm:$0xff]
    %v336 = vld [vmem:[%s331 + $0x20] sm:$0xff]
    %v337 = vld [vmem:[%s331 + $0x28] sm:$0xff]
    %v338 = vld [vmem:[%s331 + $0x30] sm:$0xff]
    %v339 = vld [vmem:[%s331 + $0x38] sm:$0xff]
    %v340 = vld [vmem:[%s331 + $0x40] sm:$0xff]
    %v341 = vld [vmem:[%s331 + $0x48] sm:$0xff]
    %v342 = vld [vmem:[%s331 + $0x50] sm:$0xff]
    %v343 = vld [vmem:[%s331 + $0x58] sm:$0xff]
    %v344 = vld [vmem:[%s331 + $0x60] sm:$0xff]
    %v345 = vld [vmem:[%s331 + $0x68] sm:$0xff]
    %v346 = vld [vmem:[%s331 + $0x70] sm:$0xff]
    %v347 = vld [vmem:[%s331 + $0x78] sm:$0xff]
    %v348 = vld [vmem:[#allocation7 + $0x3] sm:$0x1]
    %v349 = vlaneseq
    %v350 = vshrl.u32 %v349, 7
    %v351 = vsub.s32 0, %v350
    %v352 = vrot.slane %v348, %v351
    %353 = vmatprep.subr.mxu0 0.0
    %354 = vmatpush1.msra.mxu0 %v332
    %355 = vmatprep.subr.mxu0 0.0
    %356 = vmatpush1.msra.mxu0 %v333
    %357 = vmatprep.subr.mxu0 0.0
    %358 = vmatpush1.msra.mxu0 %v334
    %359 = vmatprep.subr.mxu0 0.0
    %360 = vmatpush1.msra.mxu0 %v335
    %361 = vmatprep.subr.mxu0 0.0
    %362 = vmatpush1.msra.mxu0 %v336
    %363 = vmatprep.subr.mxu0 0.0
    %364 = vmatpush1.msra.mxu0 %v337
    %365 = vmatprep.subr.mxu0 0.0
    %366 = vmatpush1.msra.mxu0 %v338
    %367 = vmatprep.subr.mxu0 0.0
    %368 = vmatpush1.msra.mxu0 %v339
    %369 = vmatprep.subr.mxu0 0.0
    %370 = vmatpush1.msra.mxu0 %v340
    %371 = vmatprep.subr.mxu0 0.0
    %372 = vmatpush1.msra.mxu0 %v341
    %373 = vmatprep.subr.mxu0 0.0
    %374 = vmatpush1.msra.mxu0 %v342
    %375 = vmatprep.subr.mxu0 0.0
    %376 = vmatpush1.msra.mxu0 %v343
    %377 = vmatprep.subr.mxu0 0.0
    %378 = vmatpush1.msra.mxu0 %v344
    %379 = vmatprep.subr.mxu0 0.0
    %380 = vmatpush1.msra.mxu0 %v345
    %381 = vmatprep.subr.mxu0 0.0
    %382 = vmatpush1.msra.mxu0 %v346
    %383 = vmatprep.subr.mxu0 0.0
    %384 = vmatpush1.msra.mxu0 %v347
    %385 = vmatprep.subr.mxu0 0.0
    %386 = vmatpush1.msra.mxu0 0.0
    %387 = vmatprep.subr.mxu0 0.0
    %388 = vmatpush1.msra.mxu0 0.0
    %389 = vmatprep.subr.mxu0 0.0
    %390 = vmatpush1.msra.mxu0 0.0
    %391 = vmatprep.subr.mxu0 0.0
    %392 = vmatpush1.msra.mxu0 0.0
    %393 = vmatprep.subr.mxu0 0.0
    %394 = vmatpush1.msra.mxu0 0.0
    %395 = vmatprep.subr.mxu0 0.0
    %396 = vmatpush1.msra.mxu0 0.0
    %397 = vmatprep.subr.mxu0 0.0
    %398 = vmatpush1.msra.mxu0 0.0
    %399 = vmatprep.subr.mxu0 0.0
    %400 = vmatpush1.msra.mxu0 0.0
    %401 = vmatprep.subr.mxu0 0.0
    %402 = vmatpush1.msra.mxu0 0.0
    %403 = vmatprep.subr.mxu0 0.0
    %404 = vmatpush1.msra.mxu0 0.0
    %405 = vmatprep.subr.mxu0 0.0
    %406 = vmatpush1.msra.mxu0 0.0
    %407 = vmatprep.subr.mxu0 0.0
    %408 = vmatpush1.msra.mxu0 0.0
    %409 = vmatprep.subr.mxu0 0.0
    %410 = vmatpush1.msra.mxu0 0.0
    %411 = vmatprep.subr.mxu0 0.0
    %412 = vmatpush1.msra.mxu0 0.0
    %413 = vmatprep.subr.mxu0 0.0
    %414 = vmatpush1.msra.mxu0 0.0
    %415 = vmatprep.subr.mxu0 0.0
    %416 = vmatpush1.msra.mxu0 0.0
    %417 = vmatprep.mubr.f32.mxu0 0.0
    %418 = vmatmul.mubr.f32.gmra.mrb[0].mxu0 %v330
    %v419 = vpop.f32.mrb[0].mxu0
    %v420 = vadd.f32 %v352, %v419
    %v421 = vpop.f32.mrb[0].mxu0
    %422 = vdwg.mxu0
    %v423 = vlaneseq
    %v424 = vand.u32 %v423, 127
    %vm425 = vcmp.lt.s32.totalorder %v424, 4
    %v426 = vsel %vm425, %v420, -1e+30
    %427 = vmax.xlane.f32.xlu0 %v426
    %v428 = vpop.xlane.xlu0 %427
    %v429 = vsub.f32 %v426, %v428
    %v430 = vmul.f32 %v429, 1.442695
    %v431 = vpow.pop %v430
    %432 = vadd.xlane.f32.xlu0 %v431
    %v433 = vpop.xlane.xlu0 %432
    %v434 = vrcp.pop %v433
    %v435 = vmul.f32 %v431, %v434
    %vm436 = vcmp.eq.s32.totalorder %v424, 4
    %v437 = vsel %vm436, %v420, 0.0
    %v438 = vadd.f32 %v435, %v437
    %439 = vst [vmem:[#allocation8] sm:$0xff] %v438
    // Predicated region
    $region26: #{tpu_custom_call.1} parent=1 // pred_check
      _
    $region27: #{tpu_custom_call.1} parent=1 // pred_check_branch
      %441 = sbr.rel (0) target = $region29
    $region28: #{tpu_custom_call.1} parent=1 // pred_region
      %s443 = ssub.s32 128, 128
      %444 = vsyncadd [#allocation4], %s443
      %s446 = sshll.u32 [#allocation8], 4
      %s447 = int_to_ptr.vmem [resolvable:$true] %s446
      %449 = dma.vmem_to_hbm [thread:$0]  %s447, 128, %s3, [#allocation4]
    $region29: #{tpu_custom_call.1} parent=1 // pred_fallthru
      _
    // Predicated region
    $region30: #{tpu_custom_call.1} parent=1 // pred_check
      _
    $region31: #{tpu_custom_call.1} parent=1 // pred_check_branch
      %451 = sbr.rel (0) target = $region33
    $region32: #{tpu_custom_call.1} parent=1 // pred_region
      %452 = dma.done [#allocation4], 128
    $region33: #{tpu_custom_call.1} parent=1 // pred_fallthru
      _
    %453 = vsyncpa [#allocation3], 1
    %454 = vsyncpa [#allocation6], 1
    %455 = vsyncpa [#allocation4], 1

</llo_original>
